<compile_context>
chip_gen: v5e
topology: v5e:2x2
jax: 0.10.0
libtpu: 0.0.40
codegen_flags: <defaults>
</compile_context>

<pallas_src>
import functools

import numpy as np
import jax
import jax.numpy as jnp
from jax import lax
from jax.experimental import pallas as pl
from jax.experimental.pallas import tpu as pltpu

NUM_CLASSES = 34
ZERO_IDX = (0, 2, 6, 7, 8, 14, 15, 16, 19, 21, 23, 25, 32, 33)

_DENSE_PACK = 64                            # original rows packed per reshaped row
_DENSE_WIDTH = _DENSE_PACK * NUM_CLASSES    # 2176 = 17 * 128 -> fully lane dense
_TB_MAX = 1024                              # reshaped rows per tile (multiple of 16)
_VMEM_LIMIT = 48 * 1024 * 1024              # explicit scoped-VMEM limit (all gens)


def _my_loss_kernel(yp_ref, yt_ref, w_ref, out_ref, *, valid_rows, needs_mask):
    """One row tile: weighted BCE partial sum, written as a per-tile output block."""
    yp = yp_ref[...].astype(jnp.float32)
    yt = yt_ref[...].astype(jnp.float32)

    if needs_mask:
        tb = yp_ref.shape[0]
        row = lax.broadcasted_iota(jnp.int32, (tb, 1), 0) + pl.program_id(0) * tb
        valid = row < valid_rows
        # Zero padded rows BEFORE the clip so garbage (inf/NaN) can't poison exp/log.
        yp = jnp.where(valid, yp, 0.0)
        yt = jnp.where(valid, yt, 0.0)

    # Clamp to [-13, 13] (matches the PyTorch in-place masked assignments).
    yp = jnp.clip(yp, -13.0, 13.0)

    # term = 1.5*yt*log(sigmoid(yp)) + (1-yt)*log(1-sigmoid(yp))
    #      = -(1 + 0.5*yt)*softplus(-yp) - (1-yt)*yp
    sp = jnp.maximum(-yp, 0.0) + jnp.log(1.0 + jnp.exp(-jnp.abs(yp)))
    term = -(1.0 + 0.5 * yt) * sp - (1.0 - yt) * yp

    w = w_ref[...]                          # (1, width), pre-scaled by -1/(N*34)
    if needs_mask:
        w = w * valid.astype(jnp.float32)   # fold row validity into the weight

    partial = jnp.sum(term * w)
    # Lane-dense (8,128) per-tile output block; wrapper reads element [0,0].
    out_ref[...] = jnp.full(out_ref.shape, partial, dtype=jnp.float32)


def my_loss(y_pred, y_true, *, tile_rows=None):
    """y_pred, y_true: [N, 34] (f32 or bf16) -> scalar f32 loss (My_loss.forward)."""
    assert y_pred.shape == y_true.shape
    n, c = y_pred.shape
    assert c == NUM_CLASSES

    scale = np.float32(-1.0 / float(n * NUM_CLASSES))
    base_w = np.ones(NUM_CLASSES, dtype=np.float32)
    base_w[list(ZERO_IDX)] = 0.0

    total = jnp.float32(0.0)

    n_main = (n // _DENSE_PACK) * _DENSE_PACK
    if n_main > 0:
        rows = n_main // _DENSE_PACK
        width = _DENSE_WIDTH
        # Row-major reshape: packs 64 batch rows per VMEM row (no transpose).
        yp_d = y_pred[:n_main].reshape(rows, width)
        yt_d = y_true[:n_main].reshape(rows, width)
        # Hoisted class weights (col mod 34 layout), pre-scaled by -1/(N*34).
        w_dense = jnp.asarray((np.tile(base_w, _DENSE_PACK) * scale)[None, :])

        tb = _TB_MAX if tile_rows is None else int(tile_rows)
        if tb < rows:
            tb = max(8, ((tb + 7) // 8) * 8)   # keep (8,128) sublane tiling happy
        tb = min(tb, rows)
        grid_n = (rows + tb - 1) // tb
        needs_mask = (rows % tb) != 0

        kernel = functools.partial(
            _my_loss_kernel, valid_rows=rows, needs_mask=needs_mask)

        partials = pl.pallas_call(
            kernel,
            out_shape=jax.ShapeDtypeStruct((grid_n * 8, 128), jnp.float32),
            grid_spec=pltpu.PrefetchScalarGridSpec(
                num_scalar_prefetch=0,
                grid=(grid_n,),
                in_specs=[
                    pl.BlockSpec((tb, width), lambda i: (i, 0)),
                    pl.BlockSpec((tb, width), lambda i: (i, 0)),
                    pl.BlockSpec((1, width), lambda i: (0, 0)),   # resident weights
                ],
                out_specs=pl.BlockSpec((8, 128), lambda i: (i, 0)),
            ),
            compiler_params=pltpu.CompilerParams(
                dimension_semantics=("parallel",),     # v7x megacore-friendly
                vmem_limit_bytes=_VMEM_LIMIT,
            ),
        )(yp_d, yt_d, w_dense)
        total = total + jnp.sum(partials.reshape(grid_n, 8, 128)[:, 0, 0])

    if n_main < n:
        # <64-row remainder: plain JAX (too small to be worth a lane-sparse kernel).
        yp_r = jnp.clip(y_pred[n_main:].astype(jnp.float32), -13.0, 13.0)
        yt_r = y_true[n_main:].astype(jnp.float32)
        sp = jnp.maximum(-yp_r, 0.0) + jnp.log1p(jnp.exp(-jnp.abs(yp_r)))
        term = -(1.0 + 0.5 * yt_r) * sp - (1.0 - yt_r) * yp_r
        total = total + jnp.sum(term * jnp.asarray(base_w * scale)[None, :])

    return total


def _reference(y_pred, y_true):
    """Plain-numpy (f64) reference mirroring the PyTorch forward."""
    w = np.ones(NUM_CLASSES, dtype=np.float64)
    w[list(ZERO_IDX)] = 0.0
    yp = np.clip(np.asarray(y_pred, np.float64), -13.0, 13.0)
    p = 1.0 / (1.0 + np.exp(-yp))
    yt = np.asarray(y_true, np.float64)
    term = 1.5 * yt * np.log(p) + (1.0 - yt) * np.log(1.0 - p)
    return -(term.mean(axis=0) * w).mean()


if __name__ == "__main__":
    key = jax.random.PRNGKey(0)
    k1, k2, k3, k4 = jax.random.split(key, 4)

    def make(kp, kt, n, dtype=jnp.float32):
        yp = (20.0 * jax.random.normal(kp, (n, NUM_CLASSES), dtype=jnp.float32)).astype(dtype)
        yt = (jax.random.uniform(kt, (n, NUM_CLASSES)) > 0.5).astype(dtype)
        return yp, yt

    # 1) N=256: lane-dense single-tile path, no masking, no remainder.
    yp, yt = make(k1, k2, 256)
    out = jax.block_until_ready(my_loss(yp, yt))
    ref = _reference(np.asarray(yp), np.asarray(yt))
    assert np.allclose(float(out), float(ref), rtol=2e-4, atol=1e-5), (float(out), float(ref))

    # 2) N=1285, tile_rows=8: multi-tile "parallel" grid with a masked ragged
    #    last tile (rows=20, tb=8) plus a 5-row remainder handled in the wrapper.
    yp, yt = make(k3, k4, 1285)
    out = jax.block_until_ready(my_loss(yp, yt, tile_rows=8))
    ref = _reference(np.asarray(yp), np.asarray(yt))
    assert np.allclose(float(out), float(ref), rtol=2e-4, atol=1e-5), (float(out), float(ref))

    # 3) bf16 inputs (half the HBM traffic; in-kernel math stays f32).
    yp, yt = make(k1, k2, 256, dtype=jnp.bfloat16)
    out = jax.block_until_ready(my_loss(yp, yt))
    ref = _reference(np.asarray(yp.astype(jnp.float32)),
                     np.asarray(yt.astype(jnp.float32)))
    assert np.allclose(float(out), float(ref), rtol=2e-4, atol=1e-5), (float(out), float(ref))

    print("KERNEL_OK")
</pallas_src>

<mosaic_0001>
module attributes {stable_mosaic.version = 11 : i64} {
  func.func @_my_loss_kernel(%arg0: i32, %arg1: memref<4x2176xf32, #tpu.memory_space<vmem>>, %arg2: memref<4x2176xf32, #tpu.memory_space<vmem>>, %arg3: memref<1x2176xf32, #tpu.memory_space<vmem>>, %arg4: memref<8x128xf32, #tpu.memory_space<vmem>>) attributes {dimension_semantics = [#tpu.dimension_semantics<parallel>], iteration_bounds = array<i64: 1>, scalar_prefetch = 0 : i64, scratch_operands = 0 : i64, tpu.core_type = #tpu.core_type<tc>, window_params = [{transform_indices = @transform_0, window_bounds = array<i64: 4, 2176>}, {transform_indices = @transform_1, window_bounds = array<i64: 4, 2176>}, {pipeline_mode = #tpu.pipeline_mode<synchronous>, transform_indices = @transform_2, window_bounds = array<i64: 1, 2176>}, {transform_indices = @transform_3, window_bounds = array<i64: 8, 128>}]} {
    %c0 = arith.constant 0 : index
    %c0_0 = arith.constant 0 : index
    %0 = vector.load %arg1[%c0, %c0_0] : memref<4x2176xf32, #tpu.memory_space<vmem>>, vector<4x2176xf32>
    %c0_1 = arith.constant 0 : index
    %c0_2 = arith.constant 0 : index
    %1 = vector.load %arg2[%c0_1, %c0_2] : memref<4x2176xf32, #tpu.memory_space<vmem>>, vector<4x2176xf32>
    %cst = arith.constant -1.300000e+01 : f32
    %cst_3 = arith.constant 1.300000e+01 : f32
    %2 = vector.broadcast %cst : f32 to vector<4x2176xf32>
    %3 = arith.maximumf %2, %0 : vector<4x2176xf32>
    %4 = vector.broadcast %cst_3 : f32 to vector<4x2176xf32>
    %5 = arith.minimumf %4, %3 : vector<4x2176xf32>
    %cst_4 = arith.constant 0.000000e+00 : f32
    %6 = vector.broadcast %cst_4 : f32 to vector<4x2176xf32>
    %7 = arith.subf %6, %5 : vector<4x2176xf32>
    %cst_5 = arith.constant 0.000000e+00 : f32
    %8 = vector.broadcast %cst_5 : f32 to vector<4x2176xf32>
    %9 = arith.maximumf %7, %8 : vector<4x2176xf32>
    %10 = math.absf %5 : vector<4x2176xf32>
    %cst_6 = arith.constant 0.000000e+00 : f32
    %11 = vector.broadcast %cst_6 : f32 to vector<4x2176xf32>
    %12 = arith.subf %11, %10 : vector<4x2176xf32>
    %13 = math.exp %12 : vector<4x2176xf32>
    %cst_7 = arith.constant 1.000000e+00 : f32
    %14 = vector.broadcast %cst_7 : f32 to vector<4x2176xf32>
    %15 = arith.addf %14, %13 : vector<4x2176xf32>
    %16 = math.log %15 : vector<4x2176xf32>
    %17 = arith.addf %9, %16 : vector<4x2176xf32>
    %cst_8 = arith.constant 5.000000e-01 : f32
    %18 = vector.broadcast %cst_8 : f32 to vector<4x2176xf32>
    %19 = arith.mulf %18, %1 : vector<4x2176xf32>
    %cst_9 = arith.constant 1.000000e+00 : f32
    %20 = vector.broadcast %cst_9 : f32 to vector<4x2176xf32>
    %21 = arith.addf %20, %19 : vector<4x2176xf32>
    %cst_10 = arith.constant 0.000000e+00 : f32
    %22 = vector.broadcast %cst_10 : f32 to vector<4x2176xf32>
    %23 = arith.subf %22, %21 : vector<4x2176xf32>
    %24 = arith.mulf %23, %17 : vector<4x2176xf32>
    %cst_11 = arith.constant 1.000000e+00 : f32
    %25 = vector.broadcast %cst_11 : f32 to vector<4x2176xf32>
    %26 = arith.subf %25, %1 : vector<4x2176xf32>
    %27 = arith.mulf %26, %5 : vector<4x2176xf32>
    %28 = arith.subf %24, %27 : vector<4x2176xf32>
    %c0_12 = arith.constant 0 : index
    %c0_13 = arith.constant 0 : index
    %29 = vector.load %arg3[%c0_12, %c0_13] : memref<1x2176xf32, #tpu.memory_space<vmem>>, vector<1x2176xf32>
    %30 = vector.broadcast %29 : vector<1x2176xf32> to vector<4x2176xf32>
    %31 = arith.mulf %28, %30 : vector<4x2176xf32>
    %32 = vector.shape_cast %31 : vector<4x2176xf32> to vector<1x4x2176xf32>
    %cst_14 = arith.constant dense<0.000000e+00> : vector<1xf32>
    %33 = vector.multi_reduction <add>, %32, %cst_14 [1, 2] : vector<1x4x2176xf32> to vector<1xf32>
    %34 = vector.shape_cast %33 : vector<1xf32> to vector<1x1x1xf32>
    %35 = vector.extract %34[0, 0, 0] : f32 from vector<1x1x1xf32>
    %36 = vector.broadcast %35 : f32 to vector<8x128xf32>
    %c0_15 = arith.constant 0 : index
    %c0_16 = arith.constant 0 : index
    %37 = vector.load %arg4[%c0_15, %c0_16] : memref<8x128xf32, #tpu.memory_space<vmem>>, vector<8x128xf32>
    tpu.vector_store %arg4[%c0_15, %c0_16], %36 {strides = array<i32>} : memref<8x128xf32, #tpu.memory_space<vmem>>, vector<8x128xf32>,
    return
  }
  func.func @transform_0(%arg0: i32) -> (i32, i32) {
    %c0_i32 = arith.constant 0 : i32
    %c0_i32_0 = arith.constant 0 : i32
    return %arg0, %c0_i32 : i32, i32
  }
  func.func @transform_1(%arg0: i32) -> (i32, i32) {
    %c0_i32 = arith.constant 0 : i32
    %c0_i32_0 = arith.constant 0 : i32
    return %arg0, %c0_i32 : i32, i32
  }
  func.func @transform_2(%arg0: i32) -> (i32, i32) {
    %c0_i32 = arith.constant 0 : i32
    %c0_i32_0 = arith.constant 0 : i32
    %c0_i32_1 = arith.constant 0 : i32
    return %c0_i32, %c0_i32_0 : i32, i32
  }
  func.func @transform_3(%arg0: i32) -> (i32, i32) {
    %c0_i32 = arith.constant 0 : i32
    %c0_i32_0 = arith.constant 0 : i32
    return %arg0, %c0_i32 : i32, i32
  }
}

</mosaic_0001>

<llo_original>
// kernel: tpu_custom_call.1
$region0: #{tpu_custom_call.1}
  #allocation0 [shape = 'u32[]', space=smem, size = 0x4, offset = 0x4, fixed_abs, tag = 'smem constant byte address 0x4 - core index']
  #allocation1 [shape = 'u32[72,128]{1,0:T(1,128)}', space=vmem, size = 0x9000, scoped, tag = 'internal scratch']
  %s0 = inlined_call_operand.hbm [shape: f32[4,2176], index: 0, kind: input, shape index: {}]
  %s1 = inlined_call_operand.hbm [shape: f32[4,2176], index: 1, kind: input, shape index: {}]
  %s2 = inlined_call_operand.hbm [shape: f32[1,2176], index: 2, kind: input, shape index: {}]
  %s3 = inlined_call_operand.hbm [shape: f32[8,128], index: 3, kind: output, shape index: {}]
  %s4 = sld [smem:[#allocation0]]
  $region34: #{tpu_custom_call.1} parent=0
    _
  %s6 = ssub.s32 1, %s4
  %s7 = scalar_select 0, %s6, %s4
  $region1: #{tpu_custom_call.1} parent=0
    #allocation2 [shape = 'u8[34816]{0}', space=vmem, size = 0x8800, scoped, tag = 'input window, operand 0, single buffered']
    #allocation3 [shape = 's32[1]{0}', space=sflag, size = 0x4, scoped, tag = 'scoped memory for tpu_custom_call.1']
    #allocation4 [shape = 's32[1]{0}', space=sflag, size = 0x4, scoped, tag = 'scoped memory for tpu_custom_call.1']
    #allocation5 [shape = 'u8[34816]{0}', space=vmem, size = 0x8800, scoped, tag = 'input window, operand 1, single buffered']
    #allocation6 [shape = 's32[1]{0}', space=sflag, size = 0x4, scoped, tag = 'scoped memory for tpu_custom_call.1']
    #allocation7 [shape = 'u8[8704]{0}', space=vmem, size = 0x2400, scoped, tag = 'input window, operand 2, single buffered']
    #allocation8 [shape = 'u8[4096]{0}', space=vmem, size = 0x1000, scoped, tag = 'output window, operand 0, single buffered']
    %8 = vsyncpa [#allocation3], 0
    %9 = vsyncpa [#allocation6], 0
    %10 = vsyncpa [#allocation4], 0
    // Predicated region
    $region2: #{tpu_custom_call.1} parent=1 // pred_check
      _
    $region3: #{tpu_custom_call.1} parent=1 // pred_check_branch
      %12 = sbr.rel (0) target = $region5
    $region4: #{tpu_custom_call.1} parent=1 // pred_region
      %14 = vsyncadd [#allocation3], 0
      %s16 = sshll.u32 %s0, 4
      %s17 = int_to_ptr.hbm [resolvable:$true] %s16
      %s18 = sshll.u32 [#allocation2], 4
      %s19 = int_to_ptr.vmem [resolvable:$true] %s18
      %21 = dma.hbm_to_vmem [thread:$0]  %s17, 1088, %s19, [#allocation3]
    $region5: #{tpu_custom_call.1} parent=1 // pred_fallthru
      _
    // Predicated region
    $region6: #{tpu_custom_call.1} parent=1 // pred_check
      _
    $region7: #{tpu_custom_call.1} parent=1 // pred_check_branch
      %23 = sbr.rel (0) target = $region9
    $region8: #{tpu_custom_call.1} parent=1 // pred_region
      %25 = vsyncadd [#allocation6], 0
      %s27 = sshll.u32 %s1, 4
      %s28 = int_to_ptr.hbm [resolvable:$true] %s27
      %s29 = sshll.u32 [#allocation5], 4
      %s30 = int_to_ptr.vmem [resolvable:$true] %s29
      %32 = dma.hbm_to_vmem [thread:$0]  %s28, 1088, %s30, [#allocation6]
    $region9: #{tpu_custom_call.1} parent=1 // pred_fallthru
      _
    // Predicated region
    $region10: #{tpu_custom_call.1} parent=1 // pred_check
      _
    $region11: #{tpu_custom_call.1} parent=1 // pred_check_branch
      %34 = sbr.rel (0) target = $region13
    $region12: #{tpu_custom_call.1} parent=1 // pred_region
      %36 = vsyncadd [#allocation6], 0
      %s38 = sshll.u32 %s2, 4
      %s39 = int_to_ptr.hbm [resolvable:$true] %s38
      %s40 = sshll.u32 [#allocation7], 4
      %s41 = int_to_ptr.vmem [resolvable:$true] %s40
      %43 = dma.hbm_to_vmem [thread:$0]  %s39, 272, %s41, [#allocation6]
    $region13: #{tpu_custom_call.1} parent=1 // pred_fallthru
      _
    // Predicated region
    $region14: #{tpu_custom_call.1} parent=1 // pred_check
      _
    $region15: #{tpu_custom_call.1} parent=1 // pred_check_branch
      %45 = sbr.rel (0) target = $region17
    $region16: #{tpu_custom_call.1} parent=1 // pred_region
      %47 = dma.done [#allocation3], 1088
    $region17: #{tpu_custom_call.1} parent=1 // pred_fallthru
      _
    // Predicated region
    $region18: #{tpu_custom_call.1} parent=1 // pred_check
      _
    $region19: #{tpu_custom_call.1} parent=1 // pred_check_branch
      %49 = sbr.rel (0) target = $region21
    $region20: #{tpu_custom_call.1} parent=1 // pred_region
      %51 = dma.done [#allocation6], 1088
    $region21: #{tpu_custom_call.1} parent=1 // pred_fallthru
      _
    // Predicated region
    $region22: #{tpu_custom_call.1} parent=1 // pred_check
      _
    $region23: #{tpu_custom_call.1} parent=1 // pred_check_branch
      %53 = sbr.rel (0) target = $region25
    $region24: #{tpu_custom_call.1} parent=1 // pred_region
      %55 = dma.done [#allocation6], 272
    $region25: #{tpu_custom_call.1} parent=1 // pred_fallthru
      _
    %v56 = vld [vmem:[#allocation2] sm:$0xff]
    %v57 = vld [vmem:[#allocation2 + $0x8] sm:$0xff]
    %v58 = vld [vmem:[#allocation2 + $0x10] sm:$0xff]
    %v59 = vld [vmem:[#allocation2 + $0x18] sm:$0xff]
    %v60 = vld [vmem:[#allocation2 + $0x20] sm:$0xff]
    %v61 = vld [vmem:[#allocation2 + $0x28] sm:$0xff]
    %v62 = vld [vmem:[#allocation2 + $0x30] sm:$0xff]
    %v63 = vld [vmem:[#allocation2 + $0x38] sm:$0xff]
    %v64 = vld [vmem:[#allocation2 + $0x40] sm:$0xf]
    %v65 = vld [vmem:[#allocation5] sm:$0xff]
    %v66 = vld [vmem:[#allocation5 + $0x8] sm:$0xff]
    %v67 = vld [vmem:[#allocation5 + $0x10] sm:$0xff]
    %v68 = vld [vmem:[#allocation5 + $0x18] sm:$0xff]
    %v69 = vld [vmem:[#allocation5 + $0x20] sm:$0xff]
    %v70 = vld [vmem:[#allocation5 + $0x28] sm:$0xff]
    %v71 = vld [vmem:[#allocation5 + $0x30] sm:$0xff]
    %v72 = vld [vmem:[#allocation5 + $0x38] sm:$0xff]
    %v73 = vld [vmem:[#allocation5 + $0x40] sm:$0xf]
    %v74 = vmax.f32 %v56, -13.0
    %v75 = vmax.f32 %v57, -13.0
    %v76 = vmax.f32 %v58, -13.0
    %v77 = vmax.f32 %v59, -13.0
    %v78 = vmax.f32 %v60, -13.0
    %v79 = vmax.f32 %v61, -13.0
    %v80 = vmax.f32 %v62, -13.0
    %v81 = vmax.f32 %v63, -13.0
    %v82 = vmax.f32 %v64, -13.0
    %v83 = vmin.f32 %v74, 13.0
    %v84 = vmin.f32 %v75, 13.0
    %v85 = vmin.f32 %v76, 13.0
    %v86 = vmin.f32 %v77, 13.0
    %v87 = vmin.f32 %v78, 13.0
    %v88 = vmin.f32 %v79, 13.0
    %v89 = vmin.f32 %v80, 13.0
    %v90 = vmin.f32 %v81, 13.0
    %v91 = vmin.f32 %v82, 13.0
    %v92 = vsub.f32 0.0, %v83
    %v93 = vsub.f32 0.0, %v84
    %v94 = vsub.f32 0.0, %v85
    %v95 = vsub.f32 0.0, %v86
    %v96 = vsub.f32 0.0, %v87
    %v97 = vsub.f32 0.0, %v88
    %v98 = vsub.f32 0.0, %v89
    %v99 = vsub.f32 0.0, %v90
    %v100 = vsub.f32 0.0, %v91
    %v101 = vmax.f32 %v92, 0.0
    %v102 = vmax.f32 %v93, 0.0
    %v103 = vmax.f32 %v94, 0.0
    %v104 = vmax.f32 %v95, 0.0
    %v105 = vmax.f32 %v96, 0.0
    %v106 = vmax.f32 %v97, 0.0
    %v107 = vmax.f32 %v98, 0.0
    %v108 = vmax.f32 %v99, 0.0
    %v109 = vmax.f32 %v100, 0.0
    %v110 = vand.u32 2147483647, %v83
    %v111 = vand.u32 2147483647, %v84
    %v112 = vand.u32 2147483647, %v85
    %v113 = vand.u32 2147483647, %v86
    %v114 = vand.u32 2147483647, %v87
    %v115 = vand.u32 2147483647, %v88
    %v116 = vand.u32 2147483647, %v89
    %v117 = vand.u32 2147483647, %v90
    %v118 = vand.u32 2147483647, %v91
    %v119 = vsub.f32 0.0, %v110
    %v120 = vsub.f32 0.0, %v111
    %v121 = vsub.f32 0.0, %v112
    %v122 = vsub.f32 0.0, %v113
    %v123 = vsub.f32 0.0, %v114
    %v124 = vsub.f32 0.0, %v115
    %v125 = vsub.f32 0.0, %v116
    %v126 = vsub.f32 0.0, %v117
    %v127 = vsub.f32 0.0, %v118
    %v128 = vmul.f32 %v119, 1.442695
    %v129 = vpow.pop %v128
    %v130 = vmul.f32 %v120, 1.442695
    %v131 = vpow.pop %v130
    %v132 = vmul.f32 %v121, 1.442695
    %v133 = vpow.pop %v132
    %v134 = vmul.f32 %v122, 1.442695
    %v135 = vpow.pop %v134
    %v136 = vmul.f32 %v123, 1.442695
    %v137 = vpow.pop %v136
    %v138 = vmul.f32 %v124, 1.442695
    %v139 = vpow.pop %v138
    %v140 = vmul.f32 %v125, 1.442695
    %v141 = vpow.pop %v140
    %v142 = vmul.f32 %v126, 1.442695
    %v143 = vpow.pop %v142
    %v144 = vmul.f32 %v127, 1.442695
    %v145 = vpow.pop %v144
    %v146 = vadd.f32 %v129, 1.0
    %v147 = vadd.f32 %v131, 1.0
    %v148 = vadd.f32 %v133, 1.0
    %v149 = vadd.f32 %v135, 1.0
    %v150 = vadd.f32 %v137, 1.0
    %v151 = vadd.f32 %v139, 1.0
    %v152 = vadd.f32 %v141, 1.0
    %v153 = vadd.f32 %v143, 1.0
    %v154 = vadd.f32 %v145, 1.0
    %v155 = vlog2.pop %v146
    %v156 = vmul.f32 %v155, 0.6931472
    %v157 = vlog2.pop %v147
    %v158 = vmul.f32 %v157, 0.6931472
    %v159 = vlog2.pop %v148
    %v160 = vmul.f32 %v159, 0.6931472
    %v161 = vlog2.pop %v149
    %v162 = vmul.f32 %v161, 0.6931472
    %v163 = vlog2.pop %v150
    %v164 = vmul.f32 %v163, 0.6931472
    %v165 = vlog2.pop %v151
    %v166 = vmul.f32 %v165, 0.6931472
    %v167 = vlog2.pop %v152
    %v168 = vmul.f32 %v167, 0.6931472
    %v169 = vlog2.pop %v153
    %v170 = vmul.f32 %v169, 0.6931472
    %v171 = vlog2.pop %v154
    %v172 = vmul.f32 %v171, 0.6931472
    %v173 = vadd.f32 %v101, %v156
    %v174 = vadd.f32 %v102, %v158
    %v175 = vadd.f32 %v103, %v160
    %v176 = vadd.f32 %v104, %v162
    %v177 = vadd.f32 %v105, %v164
    %v178 = vadd.f32 %v106, %v166
    %v179 = vadd.f32 %v107, %v168
    %v180 = vadd.f32 %v108, %v170
    %v181 = vadd.f32 %v109, %v172
    %v182 = vmul.f32 %v65, 0.5
    %v183 = vmul.f32 %v66, 0.5
    %v184 = vmul.f32 %v67, 0.5
    %v185 = vmul.f32 %v68, 0.5
    %v186 = vmul.f32 %v69, 0.5
    %v187 = vmul.f32 %v70, 0.5
    %v188 = vmul.f32 %v71, 0.5
    %v189 = vmul.f32 %v72, 0.5
    %v190 = vmul.f32 %v73, 0.5
    %v191 = vadd.f32 %v182, 1.0
    %v192 = vadd.f32 %v183, 1.0
    %v193 = vadd.f32 %v184, 1.0
    %v194 = vadd.f32 %v185, 1.0
    %v195 = vadd.f32 %v186, 1.0
    %v196 = vadd.f32 %v187, 1.0
    %v197 = vadd.f32 %v188, 1.0
    %v198 = vadd.f32 %v189, 1.0
    %v199 = vadd.f32 %v190, 1.0
    %v200 = vsub.f32 0.0, %v191
    %v201 = vsub.f32 0.0, %v192
    %v202 = vsub.f32 0.0, %v193
    %v203 = vsub.f32 0.0, %v194
    %v204 = vsub.f32 0.0, %v195
    %v205 = vsub.f32 0.0, %v196
    %v206 = vsub.f32 0.0, %v197
    %v207 = vsub.f32 0.0, %v198
    %v208 = vsub.f32 0.0, %v199
    %v209 = vmul.f32 %v200, %v173
    %v210 = vmul.f32 %v201, %v174
    %v211 = vmul.f32 %v202, %v175
    %v212 = vmul.f32 %v203, %v176
    %v213 = vmul.f32 %v204, %v177
    %v214 = vmul.f32 %v205, %v178
    %v215 = vmul.f32 %v206, %v179
    %v216 = vmul.f32 %v207, %v180
    %v217 = vmul.f32 %v208, %v181
    %v218 = vsub.f32 1.0, %v65
    %v219 = vsub.f32 1.0, %v66
    %v220 = vsub.f32 1.0, %v67
    %v221 = vsub.f32 1.0, %v68
    %v222 = vsub.f32 1.0, %v69
    %v223 = vsub.f32 1.0, %v70
    %v224 = vsub.f32 1.0, %v71
    %v225 = vsub.f32 1.0, %v72
    %v226 = vsub.f32 1.0, %v73
    %v227 = vmul.f32 %v218, %v83
    %v228 = vmul.f32 %v219, %v84
    %v229 = vmul.f32 %v220, %v85
    %v230 = vmul.f32 %v221, %v86
    %v231 = vmul.f32 %v222, %v87
    %v232 = vmul.f32 %v223, %v88
    %v233 = vmul.f32 %v224, %v89
    %v234 = vmul.f32 %v225, %v90
    %v235 = vmul.f32 %v226, %v91
    %v236 = vsub.f32 %v209, %v227
    %v237 = vsub.f32 %v210, %v228
    %v238 = vsub.f32 %v211, %v229
    %v239 = vsub.f32 %v212, %v230
    %v240 = vsub.f32 %v213, %v231
    %v241 = vsub.f32 %v214, %v232
    %v242 = vsub.f32 %v215, %v233
    %v243 = vsub.f32 %v216, %v234
    %v244 = vsub.f32 %v217, %v235
    %v245 = vld [vmem:[#allocation7] sm:$0xff]
    %v246 = vld [vmem:[#allocation7 + $0x8] sm:$0xff]
    %v247 = vld [vmem:[#allocation7 + $0x10] sm:$0x1]
    %v251 = vperm.slane %v245, 0
    %v252 = vperm.slane %v245, 1
    %v253 = vperm.slane %v245, 2
    %v254 = vperm.slane %v245, 3
    %v255 = vperm.slane %v245, 4
    %v256 = vperm.slane %v245, 5
    %v257 = vperm.slane %v245, 6
    %v258 = vperm.slane %v245, 7
    %v259 = vperm.slane %v246, 0
    %v260 = vperm.slane %v246, 1
    %v261 = vperm.slane %v246, 2
    %v262 = vperm.slane %v246, 3
    %v263 = vperm.slane %v246, 4
    %v264 = vperm.slane %v246, 5
    %v265 = vperm.slane %v246, 6
    %v266 = vperm.slane %v246, 7
    %v267 = vperm.slane %v247, 0
    %v269 = vrot.slane %v252, 4
    %v270 = vrot.slane %v254, 4
    %v271 = vrot.slane %v256, 4
    %v272 = vrot.slane %v258, 4
    %v273 = vrot.slane %v260, 4
    %v274 = vrot.slane %v262, 4
    %v275 = vrot.slane %v264, 4
    %v276 = vrot.slane %v266, 4
    %vm277 = vcmask 1043456
    %v278 = vsel %vm277, %v251, %v269
    %v279 = vsel %vm277, %v253, %v270
    %v280 = vsel %vm277, %v255, %v271
    %v281 = vsel %vm277, %v257, %v272
    %v282 = vsel %vm277, %v259, %v273
    %v283 = vsel %vm277, %v261, %v274
    %v284 = vsel %vm277, %v263, %v275
    %v285 = vsel %vm277, %v265, %v276
    %v294 = vmul.f32 %v236, %v278
    %v295 = vmul.f32 %v237, %v279
    %v296 = vmul.f32 %v238, %v280
    %v297 = vmul.f32 %v239, %v281
    %v298 = vmul.f32 %v240, %v282
    %v299 = vmul.f32 %v241, %v283
    %v300 = vmul.f32 %v242, %v284
    %v301 = vmul.f32 %v243, %v285
    %v302 = vmul.f32 %v244, %v267
    %312 = vst [vmem:[#allocation1] ss:$2 sm:$0xff] %v294
    %s313 = scalar_lea.vmem [#allocation1], 16
    %314 = vst [vmem:[%s313] ss:$2 sm:$0xff] %v295
    %s315 = scalar_lea.vmem [#allocation1], 32
    %316 = vst [vmem:[%s315] ss:$2 sm:$0xff] %v296
    %s317 = scalar_lea.vmem [#allocation1], 48
    %318 = vst [vmem:[%s317] ss:$2 sm:$0xff] %v297
    %v319 = vld.sshfl [vmem:[#allocation1] sm:$0xff pattern:$0x75316420]
    %v320 = vld.sshfl [vmem:[#allocation1 + $0x8] sm:$0xff pattern:$0x75316420]
    %v321 = vld.sshfl [vmem:[#allocation1 + $0x10] sm:$0xff pattern:$0x75316420]
    %v322 = vld.sshfl [vmem:[#allocation1 + $0x18] sm:$0xff pattern:$0x75316420]
    %v323 = vld.sshfl [vmem:[#allocation1 + $0x20] sm:$0xff pattern:$0x75316420]
    %v324 = vld.sshfl [vmem:[#allocation1 + $0x28] sm:$0xff pattern:$0x75316420]
    %v325 = vld.sshfl [vmem:[#allocation1 + $0x30] sm:$0xff pattern:$0x75316420]
    %v326 = vld.sshfl [vmem:[#allocation1 + $0x38] sm:$0xff pattern:$0x75316420]
    %327 = vst [vmem:[#allocation1] ss:$2 sm:$0xff] %v298
    %328 = vst [vmem:[%s313] ss:$2 sm:$0xff] %v299
    %329 = vst [vmem:[%s315] ss:$2 sm:$0xff] %v300
    %330 = vst [vmem:[%s317] ss:$2 sm:$0xff] %v301
    %v331 = vld.sshfl [vmem:[#allocation1] sm:$0xff pattern:$0x75316420]
    %v332 = vld.sshfl [vmem:[#allocation1 + $0x8] sm:$0xff pattern:$0x75316420]
    %v333 = vld.sshfl [vmem:[#allocation1 + $0x10] sm:$0xff pattern:$0x75316420]
    %v334 = vld.sshfl [vmem:[#allocation1 + $0x18] sm:$0xff pattern:$0x75316420]
    %v335 = vld.sshfl [vmem:[#allocation1 + $0x20] sm:$0xff pattern:$0x75316420]
    %v336 = vld.sshfl [vmem:[#allocation1 + $0x28] sm:$0xff pattern:$0x75316420]
    %v337 = vld.sshfl [vmem:[#allocation1 + $0x30] sm:$0xff pattern:$0x75316420]
    %v338 = vld.sshfl [vmem:[#allocation1 + $0x38] sm:$0xff pattern:$0x75316420]
    %339 = vst [vmem:[#allocation1] ss:$2 sm:$0xff] %v302
    %v340 = vld.sshfl [vmem:[#allocation1] sm:$0xff pattern:$0x75316420]
    %v358 = vsel %vm277, %v319, 0.0
    %v359 = vsel %vm277, %v320, 0.0
    %v360 = vadd.f32 %v358, %v359
    %v361 = vsel %vm277, %v321, 0.0
    %v362 = vadd.f32 %v360, %v361
    %v363 = vsel %vm277, %v322, 0.0
    %v364 = vadd.f32 %v362, %v363
    %v365 = vsel %vm277, %v323, 0.0
    %v366 = vadd.f32 %v364, %v365
    %v367 = vsel %vm277, %v324, 0.0
    %v368 = vadd.f32 %v366, %v367
    %v369 = vsel %vm277, %v325, 0.0
    %v370 = vadd.f32 %v368, %v369
    %v371 = vsel %vm277, %v326, 0.0
    %v372 = vadd.f32 %v370, %v371
    %v373 = vsel %vm277, %v331, 0.0
    %v374 = vadd.f32 %v372, %v373
    %v375 = vsel %vm277, %v332, 0.0
    %v376 = vadd.f32 %v374, %v375
    %v377 = vsel %vm277, %v333, 0.0
    %v378 = vadd.f32 %v376, %v377
    %v379 = vsel %vm277, %v334, 0.0
    %v380 = vadd.f32 %v378, %v379
    %v381 = vsel %vm277, %v335, 0.0
    %v382 = vadd.f32 %v380, %v381
    %v383 = vsel %vm277, %v336, 0.0
    %v384 = vadd.f32 %v382, %v383
    %v385 = vsel %vm277, %v337, 0.0
    %v386 = vadd.f32 %v384, %v385
    %v387 = vsel %vm277, %v338, 0.0
    %v388 = vadd.f32 %v386, %v387
    %v389 = vsel %vm277, %v340, 0.0
    %v390 = vadd.f32 %v388, %v389
    %391 = vadd.xlane.f32.xlu0 %v390
    %v392 = vpop.xlane.xlu0 %391
    %v393 = vrot.slane %v392, 4
    %v394 = vadd.f32 %v392, %v393
    %v395 = vrot.slane %v394, 2
    %v396 = vadd.f32 %v394, %v395
    %v397 = vrot.slane %v396, 1
    %v398 = vadd.f32 %v396, %v397
    %s399 = vtos %v398
    %v400 = vstv %s399
    %401 = vst [vmem:[#allocation8] sm:$0xff] %v400
    // Predicated region
    $region26: #{tpu_custom_call.1} parent=1 // pred_check
      _
    $region27: #{tpu_custom_call.1} parent=1 // pred_check_branch
      %403 = sbr.rel (0) target = $region29
    $region28: #{tpu_custom_call.1} parent=1 // pred_region
      %405 = vsyncadd [#allocation4], 0
      %s407 = sshll.u32 [#allocation8], 4
      %s408 = int_to_ptr.vmem [resolvable:$true] %s407
      %s409 = sshll.u32 %s3, 4
      %s410 = int_to_ptr.hbm [resolvable:$true] %s409
      %412 = dma.vmem_to_hbm [thread:$0]  %s408, 128, %s410, [#allocation4]
    $region29: #{tpu_custom_call.1} parent=1 // pred_fallthru
      _
    // Predicated region
    $region30: #{tpu_custom_call.1} parent=1 // pred_check
      _
    $region31: #{tpu_custom_call.1} parent=1 // pred_check_branch
      %414 = sbr.rel (0) target = $region33
    $region32: #{tpu_custom_call.1} parent=1 // pred_region
      %416 = dma.done [#allocation4], 128
    $region33: #{tpu_custom_call.1} parent=1 // pred_fallthru
      _
    %417 = vsyncpa [#allocation3], 1
    %418 = vsyncpa [#allocation6], 1
    %419 = vsyncpa [#allocation4], 1

</llo_original>
